<compile_context>
chip_gen: v7x
topology: tpu7x:2x2x1
jax: 0.10.0
libtpu: 0.0.40
codegen_flags: <defaults>
</compile_context>

<pallas_src>
import functools

import jax
import jax.numpy as jnp
from jax.experimental import pallas as pl
from jax.experimental.pallas import tpu as pltpu

LANE = 128


def _round_up(x, m):
    return ((x + m - 1) // m) * m


def dqn_kernel(xt_ref, w1_ref, b1_ref, w2_ref, b2_ref, w3_ref, b3_ref, o_ref):
    # fc1 + relu : (fc1, bb)
    h1 = jnp.dot(w1_ref[...], xt_ref[...], preferred_element_type=jnp.float32)
    h1 = jnp.maximum(h1 + b1_ref[...], 0.0)
    # fc2 + relu : (fc2, bb)
    h2 = jnp.dot(w2_ref[...], h1.astype(w2_ref.dtype),
                 preferred_element_type=jnp.float32)
    h2 = jnp.maximum(h2 + b2_ref[...], 0.0)
    # fc3 (no activation) : (n_actions, bb) -- lane-dense along batch
    out = jnp.dot(w3_ref[...], h2.astype(w3_ref.dtype),
                  preferred_element_type=jnp.float32)
    o_ref[...] = (out + b3_ref[...]).astype(o_ref.dtype)


@functools.partial(jax.jit, static_argnames=("block_b",))
def dqn_forward(x, w1, b1, w2, b2, w3, b3, *, block_b=256):
    """Forward of DeepQNetwork.

    x  : (B, in_dim)
    w1 : (fc1, in_dim), b1 : (fc1,)          -- PyTorch nn.Linear (out, in) layout
    w2 : (fc2, fc1),    b2 : (fc2,)
    w3 : (n_actions, fc2), b3 : (n_actions,)
    returns (B, n_actions)
    """
    B, in_dim = x.shape
    fc1_dims = w1.shape[0]
    fc2_dims = w2.shape[0]
    n_actions = w3.shape[0]
    out_dtype = x.dtype

    # --- wrapper-side layout / dtype plumbing -------------------------------
    compute_dtype = jnp.bfloat16
    xt = x.T.astype(compute_dtype)            # (in_dim, B): batch on lanes
    w1_c = w1.astype(compute_dtype)
    w2_c = w2.astype(compute_dtype)
    w3_c = w3.astype(compute_dtype)
    b1_c = b1.astype(jnp.float32).reshape(fc1_dims, 1)   # broadcast over lanes
    b2_c = b2.astype(jnp.float32).reshape(fc2_dims, 1)
    b3_c = b3.astype(jnp.float32).reshape(n_actions, 1)

    # Batch tile on the lane axis: multiple of 128.  Default gives >=4 grid
    # steps for the demo batch (>=2 per TC on v7x); few enough that per-step
    # overhead is negligible on single-TC v5e/v6e.
    bb = _round_up(min(block_b, _round_up(B, LANE)), LANE)
    B_pad = _round_up(B, bb)
    if B_pad != B:
        xt = jnp.pad(xt, ((0, 0), (0, B_pad - B)))   # zero batch columns: exact

    grid = (B_pad // bb,)

    def batch_map(i):
        return (0, i)

    def rep_map(i):
        return (0, 0)

    flops = 2 * B_pad * (in_dim * fc1_dims + fc1_dims * fc2_dims
                         + fc2_dims * n_actions)
    bytes_accessed = (
        xt.size * xt.dtype.itemsize
        + (w1_c.size + w2_c.size + w3_c.size) * 2
        + (b1_c.size + b2_c.size + b3_c.size) * 4
        + n_actions * B_pad * jnp.dtype(out_dtype).itemsize
    )

    out_t = pl.pallas_call(
        dqn_kernel,
        out_shape=jax.ShapeDtypeStruct((n_actions, B_pad), out_dtype),
        grid_spec=pltpu.PrefetchScalarGridSpec(
            num_scalar_prefetch=0,
            grid=grid,
            in_specs=[
                pl.BlockSpec((in_dim, bb), batch_map),          # x^T tile
                pl.BlockSpec((fc1_dims, in_dim), rep_map),      # W1 (resident)
                pl.BlockSpec((fc1_dims, 1), rep_map),           # b1 column
                pl.BlockSpec((fc2_dims, fc1_dims), rep_map),    # W2 (resident)
                pl.BlockSpec((fc2_dims, 1), rep_map),           # b2 column
                pl.BlockSpec((n_actions, fc2_dims), rep_map),   # W3 (resident)
                pl.BlockSpec((n_actions, 1), rep_map),          # b3 column
            ],
            out_specs=pl.BlockSpec((n_actions, bb), batch_map),
        ),
        compiler_params=pltpu.CompilerParams(
            dimension_semantics=("parallel",),
        ),
        cost_estimate=pl.CostEstimate(
            flops=flops, transcendentals=0, bytes_accessed=bytes_accessed),
    )(xt, w1_c, b1_c, w2_c, b2_c, w3_c, b3_c)

    # Restore the (B, n_actions) contract of the PyTorch forward.
    return out_t.T[:B, :]


def init_linear(key, fan_in, fan_out, dtype=jnp.float32):
    """Deterministic init mimicking torch.nn.Linear default U(-1/sqrt(fan_in), +).

    Weights are stored in PyTorch layout (out_features, in_features)."""
    kw, kb = jax.random.split(key)
    bound = 1.0 / jnp.sqrt(jnp.float32(fan_in))
    w = jax.random.uniform(kw, (fan_out, fan_in), dtype, -bound, bound)
    b = jax.random.uniform(kb, (fan_out,), dtype, -bound, bound)
    return w, b


def ref_forward(x, w1, b1, w2, b2, w3, b3):
    """Pure-JAX reference with the same bf16 rounding as the kernel."""
    c = lambda a: a.astype(jnp.bfloat16).astype(jnp.float32)
    h1 = jnp.maximum(c(x) @ c(w1).T + b1, 0.0)
    h2 = jnp.maximum(c(h1) @ c(w2).T + b2, 0.0)
    return c(h2) @ c(w3).T + b3


if __name__ == "__main__":
    # Shapes consistent with DeepQNetwork(lr, input_dims=(16,), fc1_dims=32,
    # fc2_dims=32, n_actions=4) applied to a batch of states.  batch=1024 with
    # block_b=256 gives a 4-step "parallel" grid (>=2 steps per v7x TC).
    batch = 1024
    input_dims = 16
    fc1_dims = 32
    fc2_dims = 32
    n_actions = 4

    key = jax.random.PRNGKey(0)
    kx, k1, k2, k3 = jax.random.split(key, 4)

    x = jax.random.normal(kx, (batch, input_dims), jnp.float32)
    w1, b1 = init_linear(k1, input_dims, fc1_dims)
    w2, b2 = init_linear(k2, fc1_dims, fc2_dims)
    w3, b3 = init_linear(k3, fc2_dims, n_actions)

    actions = dqn_forward(x, w1, b1, w2, b2, w3, b3, block_b=256)
    actions = jax.block_until_ready(actions)

    ref = ref_forward(x, w1, b1, w2, b2, w3, b3)
    assert actions.shape == (batch, n_actions)
    assert jnp.allclose(actions, ref, atol=1e-2, rtol=1e-2), (
        float(jnp.max(jnp.abs(actions - ref))))

    # TODO(synk): optimizer (Adam) / MSELoss from the PyTorch module are
    # training-time components, not part of the forward pass, and are omitted.
    print("KERNEL_OK")
</pallas_src>

<mosaic_0001>
module attributes {stable_mosaic.version = 11 : i64} {
  func.func @dqn_kernel(%arg0: i32, %arg1: memref<16x256xbf16, #tpu.memory_space<vmem>>, %arg2: memref<32x16xbf16, #tpu.memory_space<vmem>>, %arg3: memref<32x1xf32, #tpu.memory_space<vmem>>, %arg4: memref<32x32xbf16, #tpu.memory_space<vmem>>, %arg5: memref<32x1xf32, #tpu.memory_space<vmem>>, %arg6: memref<4x32xbf16, #tpu.memory_space<vmem>>, %arg7: memref<4x1xf32, #tpu.memory_space<vmem>>, %arg8: memref<4x256xf32, #tpu.memory_space<vmem>>) attributes {dimension_semantics = [#tpu.dimension_semantics<parallel>], iteration_bounds = array<i64: 4>, scalar_prefetch = 0 : i64, scratch_operands = 0 : i64, tpu.core_type = #tpu.core_type<tc>, window_params = [{transform_indices = @transform_0, window_bounds = array<i64: 16, 256>}, {pipeline_mode = #tpu.pipeline_mode<synchronous>, transform_indices = @transform_1, window_bounds = array<i64: 32, 16>}, {pipeline_mode = #tpu.pipeline_mode<synchronous>, transform_indices = @transform_2, window_bounds = array<i64: 32, 1>}, {pipeline_mode = #tpu.pipeline_mode<synchronous>, transform_indices = @transform_3, window_bounds = array<i64: 32, 32>}, {pipeline_mode = #tpu.pipeline_mode<synchronous>, transform_indices = @transform_4, window_bounds = array<i64: 32, 1>}, {pipeline_mode = #tpu.pipeline_mode<synchronous>, transform_indices = @transform_5, window_bounds = array<i64: 4, 32>}, {pipeline_mode = #tpu.pipeline_mode<synchronous>, transform_indices = @transform_6, window_bounds = array<i64: 4, 1>}, {transform_indices = @transform_7, window_bounds = array<i64: 4, 256>}]} {
    %c0 = arith.constant 0 : index
    %c0_0 = arith.constant 0 : index
    %0 = vector.load %arg2[%c0, %c0_0] : memref<32x16xbf16, #tpu.memory_space<vmem>>, vector<32x16xbf16>
    %c0_1 = arith.constant 0 : index
    %c0_2 = arith.constant 0 : index
    %1 = vector.load %arg1[%c0_1, %c0_2] : memref<16x256xbf16, #tpu.memory_space<vmem>>, vector<16x256xbf16>
    %cst = arith.constant dense<0.000000e+00> : vector<32x256xf32>
    %2 = tpu.matmul %0, %1, %cst {dimension_numbers = #tpu.dot_dimension_numbers<[1], [0], [0], [1], [0, 0, 1, 1], [], []>} : vector<32x16xbf16>, vector<16x256xbf16>, vector<32x256xf32> -> vector<32x256xf32>
    %c0_3 = arith.constant 0 : index
    %c0_4 = arith.constant 0 : index
    %3 = vector.load %arg3[%c0_3, %c0_4] : memref<32x1xf32, #tpu.memory_space<vmem>>, vector<32x1xf32>
    %4 = vector.broadcast %3 : vector<32x1xf32> to vector<32x256xf32>
    %5 = arith.addf %2, %4 : vector<32x256xf32>
    %cst_5 = arith.constant 0.000000e+00 : f32
    %6 = vector.broadcast %cst_5 : f32 to vector<32x256xf32>
    %7 = arith.maximumf %5, %6 : vector<32x256xf32>
    %c0_6 = arith.constant 0 : index
    %c0_7 = arith.constant 0 : index
    %8 = vector.load %arg4[%c0_6, %c0_7] : memref<32x32xbf16, #tpu.memory_space<vmem>>, vector<32x32xbf16>
    %9 = arith.truncf %7 : vector<32x256xf32> to vector<32x256xbf16>
    %cst_8 = arith.constant dense<0.000000e+00> : vector<32x256xf32>
    %10 = tpu.matmul %8, %9, %cst_8 {dimension_numbers = #tpu.dot_dimension_numbers<[1], [0], [0], [1], [0, 0, 1, 1], [], []>} : vector<32x32xbf16>, vector<32x256xbf16>, vector<32x256xf32> -> vector<32x256xf32>
    %c0_9 = arith.constant 0 : index
    %c0_10 = arith.constant 0 : index
    %11 = vector.load %arg5[%c0_9, %c0_10] : memref<32x1xf32, #tpu.memory_space<vmem>>, vector<32x1xf32>
    %12 = vector.broadcast %11 : vector<32x1xf32> to vector<32x256xf32>
    %13 = arith.addf %10, %12 : vector<32x256xf32>
    %cst_11 = arith.constant 0.000000e+00 : f32
    %14 = vector.broadcast %cst_11 : f32 to vector<32x256xf32>
    %15 = arith.maximumf %13, %14 : vector<32x256xf32>
    %c0_12 = arith.constant 0 : index
    %c0_13 = arith.constant 0 : index
    %16 = vector.load %arg6[%c0_12, %c0_13] : memref<4x32xbf16, #tpu.memory_space<vmem>>, vector<4x32xbf16>
    %17 = arith.truncf %15 : vector<32x256xf32> to vector<32x256xbf16>
    %cst_14 = arith.constant dense<0.000000e+00> : vector<4x256xf32>
    %18 = tpu.matmul %16, %17, %cst_14 {dimension_numbers = #tpu.dot_dimension_numbers<[1], [0], [0], [1], [0, 0, 1, 1], [], []>} : vector<4x32xbf16>, vector<32x256xbf16>, vector<4x256xf32> -> vector<4x256xf32>
    %c0_15 = arith.constant 0 : index
    %c0_16 = arith.constant 0 : index
    %19 = vector.load %arg7[%c0_15, %c0_16] : memref<4x1xf32, #tpu.memory_space<vmem>>, vector<4x1xf32>
    %20 = vector.broadcast %19 : vector<4x1xf32> to vector<4x256xf32>
    %21 = arith.addf %18, %20 : vector<4x256xf32>
    %c0_17 = arith.constant 0 : index
    %c0_18 = arith.constant 0 : index
    %22 = vector.load %arg8[%c0_17, %c0_18] : memref<4x256xf32, #tpu.memory_space<vmem>>, vector<4x256xf32>
    tpu.vector_store %arg8[%c0_17, %c0_18], %21 {strides = array<i32>} : memref<4x256xf32, #tpu.memory_space<vmem>>, vector<4x256xf32>,
    return
  }
  func.func @transform_0(%arg0: i32) -> (i32, i32) {
    %c0_i32 = arith.constant 0 : i32
    %c0_i32_0 = arith.constant 0 : i32
    return %c0_i32, %arg0 : i32, i32
  }
  func.func @transform_1(%arg0: i32) -> (i32, i32) {
    %c0_i32 = arith.constant 0 : i32
    %c0_i32_0 = arith.constant 0 : i32
    %c0_i32_1 = arith.constant 0 : i32
    return %c0_i32, %c0_i32_0 : i32, i32
  }
  func.func @transform_2(%arg0: i32) -> (i32, i32) {
    %c0_i32 = arith.constant 0 : i32
    %c0_i32_0 = arith.constant 0 : i32
    %c0_i32_1 = arith.constant 0 : i32
    return %c0_i32, %c0_i32_0 : i32, i32
  }
  func.func @transform_3(%arg0: i32) -> (i32, i32) {
    %c0_i32 = arith.constant 0 : i32
    %c0_i32_0 = arith.constant 0 : i32
    %c0_i32_1 = arith.constant 0 : i32
    return %c0_i32, %c0_i32_0 : i32, i32
  }
  func.func @transform_4(%arg0: i32) -> (i32, i32) {
    %c0_i32 = arith.constant 0 : i32
    %c0_i32_0 = arith.constant 0 : i32
    %c0_i32_1 = arith.constant 0 : i32
    return %c0_i32, %c0_i32_0 : i32, i32
  }
  func.func @transform_5(%arg0: i32) -> (i32, i32) {
    %c0_i32 = arith.constant 0 : i32
    %c0_i32_0 = arith.constant 0 : i32
    %c0_i32_1 = arith.constant 0 : i32
    return %c0_i32, %c0_i32_0 : i32, i32
  }
  func.func @transform_6(%arg0: i32) -> (i32, i32) {
    %c0_i32 = arith.constant 0 : i32
    %c0_i32_0 = arith.constant 0 : i32
    %c0_i32_1 = arith.constant 0 : i32
    return %c0_i32, %c0_i32_0 : i32, i32
  }
  func.func @transform_7(%arg0: i32) -> (i32, i32) {
    %c0_i32 = arith.constant 0 : i32
    %c0_i32_0 = arith.constant 0 : i32
    return %c0_i32, %arg0 : i32, i32
  }
}

</mosaic_0001>

<llo_original>
// kernel: dqn_forward.1
$region0: #{dqn_forward.1}
  #allocation0 [shape = 'u32[]', space=smem, size = 0x4, offset = 0x4, fixed_abs, tag = 'smem constant byte address 0x4 - core index']
  #allocation1 [shape = 'u32[144,128]{1,0:T(1,128)}', space=vmem, size = 0x12000, scoped, tag = 'internal scratch']
  %s0 = inlined_call_operand.vmem [shape: bf16[16,1024], index: 0, kind: input, shape index: {}]
  %s1 = inlined_call_operand.vmem [shape: bf16[32,16], index: 1, kind: input, shape index: {}]
  %s2 = inlined_call_operand.vmem [shape: f32[32,1], index: 2, kind: input, shape index: {}]
  %s3 = inlined_call_operand.vmem [shape: bf16[32,32], index: 3, kind: input, shape index: {}]
  %s4 = inlined_call_operand.vmem [shape: f32[32,1], index: 4, kind: input, shape index: {}]
  %s5 = inlined_call_operand.vmem [shape: bf16[4,32], index: 5, kind: input, shape index: {}]
  %s6 = inlined_call_operand.vmem [shape: f32[4,1], index: 6, kind: input, shape index: {}]
  %s7 = inlined_call_operand.hbm [shape: f32[4,1024], index: 7, kind: output, shape index: {}]
  %s8 = sld [smem:[#allocation0]]
  $region99: #{dqn_forward.1} parent=0
    _
  %s10 = ssub.s32 1, %s8
  %s11 = scalar_select 0, %s10, %s8
  $region1: #{dqn_forward.1} parent=0
    #allocation2 [shape = 'u8[16384]{0}', space=vmem, size = 0x4000, scoped, tag = 'input window, operand 0']
    #allocation3 [shape = 'u8[8192]{0}', space=vmem, size = 0x2000, scoped, tag = 'output window, operand 0']
    #allocation4 [shape = 's32[2]{0}', space=sflag, size = 0x8, scoped, tag = 'scoped memory for dqn_forward.1']
    %12 = vsyncpa [#allocation4], 0
    %s13 = scalar_lea.sflag [#allocation4], 1
    %14 = vsyncpa %s13, 0
    loop: start=0, step=1, limit=6
    $region2: #{dqn_forward.1} parent=1 // loop_pre_header
      _
    $region3: #{dqn_forward.1} parent=1 // loop_header
      %s16 = sphi 0, %s20
      %p17 = scmp.ge.s32.totalorder %s16, 6
      %s26 = sphi 0, %s28
      %s29 = sphi 0, %s26
      %s30 = sphi 0, %s29
      %s46 = sphi 0, %s30
      %s50 = sphi 0, %s50
      %s52 = sphi 0, %s50
      %s53 = sphi 0, %s52
      %s67 = sphi 0, %s53
      %s71 = sphi 0, %s71
      %s73 = sphi 0, %s71
      %s74 = sphi 0, %s73
      %s88 = sphi 0, %s74
      %s92 = sphi 0, %s92
      %s94 = sphi 0, %s92
      %s95 = sphi 0, %s94
      %s109 = sphi 0, %s95
      %s113 = sphi 0, %s113
      %s115 = sphi 0, %s113
      %s116 = sphi 0, %s115
      %s130 = sphi 0, %s116
      %s134 = sphi 0, %s134
      %s136 = sphi 0, %s134
      %s137 = sphi 0, %s136
      %s151 = sphi 0, %s137
      %s155 = sphi 0, %s155
      %s157 = sphi 0, %s155
      %s158 = sphi 0, %s157
      %s172 = sphi 0, %s158
      %s178 = sphi 0, %s180
      %s181 = sphi 0, %s178
      %s182 = sphi 0, %s181
      %s198 = sphi 0, %s182
    $region4: #{dqn_forward.1} parent=1 // loop_header_branch
      %19 = sbr.rel (%p17) target = $region8
    $region5: #{dqn_forward.1} parent=1 // loop_body
      %s21 = ssub.s32 %s16, 1
      %s22 = ssub.s32 %s16, 2
      %s23 = sadd.s32 %s16, 1
      %s24 = ssub.s32 %s16, %s23
      %p25 = scmp.eq.s32.totalorder %s24, 0
      %s27 = sadd.s32 %s26, 1
      %s28 = scalar_select %p25, %s26, %s27
      %p31 = pneg %p25
      %p32 = scmp.eq.s32.totalorder %s16, 3
      %p33 = por %p31, %p32
      %p34 = scmp.ne.s32.totalorder %s26, %s29
      %p35 = scmp.eq.s32.totalorder %s16, 0
      %p36 = por %p34, %p35
      %p37 = scmp.ne.s32.totalorder %s26, %s29
      %p38 = scmp.eq.s32.totalorder %s21, 3
      %p39 = por %p37, %p38
      %p40 = scmp.ne.s32.totalorder %s29, %s30
      %p41 = scmp.eq.s32.totalorder %s21, 0
      %p42 = por %p40, %p41
      %p43 = scmp.ne.s32.totalorder %s29, %s30
      %p44 = scmp.eq.s32.totalorder %s22, 3
      %p45 = por %p43, %p44
      %p47 = scmp.ne.s32.totalorder %s30, %s46
      %p48 = scmp.eq.s32.totalorder %s22, 0
      %p49 = por %p47, %p48
      %s51 = sadd.s32 %s50, 1
      %p54 = scmp.eq.s32.totalorder %s16, 3
      %p55 = scmp.ne.s32.totalorder %s50, %s52
      %p56 = scmp.eq.s32.totalorder %s16, 0
      %p57 = por %p55, %p56
      %p58 = scmp.ne.s32.totalorder %s50, %s52
      %p59 = scmp.eq.s32.totalorder %s21, 3
      %p60 = por %p58, %p59
      %p61 = scmp.ne.s32.totalorder %s52, %s53
      %p62 = scmp.eq.s32.totalorder %s21, 0
      %p63 = por %p61, %p62
      %p64 = scmp.ne.s32.totalorder %s52, %s53
      %p65 = scmp.eq.s32.totalorder %s22, 3
      %p66 = por %p64, %p65
      %p68 = scmp.ne.s32.totalorder %s53, %s67
      %p69 = scmp.eq.s32.totalorder %s22, 0
      %p70 = por %p68, %p69
      %s72 = sadd.s32 %s71, 1
      %p75 = scmp.eq.s32.totalorder %s16, 3
      %p76 = scmp.ne.s32.totalorder %s71, %s73
      %p77 = scmp.eq.s32.totalorder %s16, 0
      %p78 = por %p76, %p77
      %p79 = scmp.ne.s32.totalorder %s71, %s73
      %p80 = scmp.eq.s32.totalorder %s21, 3
      %p81 = por %p79, %p80
      %p82 = scmp.ne.s32.totalorder %s73, %s74
      %p83 = scmp.eq.s32.totalorder %s21, 0
      %p84 = por %p82, %p83
      %p85 = scmp.ne.s32.totalorder %s73, %s74
      %p86 = scmp.eq.s32.totalorder %s22, 3
      %p87 = por %p85, %p86
      %p89 = scmp.ne.s32.totalorder %s74, %s88
      %p90 = scmp.eq.s32.totalorder %s22, 0
      %p91 = por %p89, %p90
      %s93 = sadd.s32 %s92, 1
      %p96 = scmp.eq.s32.totalorder %s16, 3
      %p97 = scmp.ne.s32.totalorder %s92, %s94
      %p98 = scmp.eq.s32.totalorder %s16, 0
      %p99 = por %p97, %p98
      %p100 = scmp.ne.s32.totalorder %s92, %s94
      %p101 = scmp.eq.s32.totalorder %s21, 3
      %p102 = por %p100, %p101
      %p103 = scmp.ne.s32.totalorder %s94, %s95
      %p104 = scmp.eq.s32.totalorder %s21, 0
      %p105 = por %p103, %p104
      %p106 = scmp.ne.s32.totalorder %s94, %s95
      %p107 = scmp.eq.s32.totalorder %s22, 3
      %p108 = por %p106, %p107
      %p110 = scmp.ne.s32.totalorder %s95, %s109
      %p111 = scmp.eq.s32.totalorder %s22, 0
      %p112 = por %p110, %p111
      %s114 = sadd.s32 %s113, 1
      %p117 = scmp.eq.s32.totalorder %s16, 3
      %p118 = scmp.ne.s32.totalorder %s113, %s115
      %p119 = scmp.eq.s32.totalorder %s16, 0
      %p120 = por %p118, %p119
      %p121 = scmp.ne.s32.totalorder %s113, %s115
      %p122 = scmp.eq.s32.totalorder %s21, 3
      %p123 = por %p121, %p122
      %p124 = scmp.ne.s32.totalorder %s115, %s116
      %p125 = scmp.eq.s32.totalorder %s21, 0
      %p126 = por %p124, %p125
      %p127 = scmp.ne.s32.totalorder %s115, %s116
      %p128 = scmp.eq.s32.totalorder %s22, 3
      %p129 = por %p127, %p128
      %p131 = scmp.ne.s32.totalorder %s116, %s130
      %p132 = scmp.eq.s32.totalorder %s22, 0
      %p133 = por %p131, %p132
      %s135 = sadd.s32 %s134, 1
      %p138 = scmp.eq.s32.totalorder %s16, 3
      %p139 = scmp.ne.s32.totalorder %s134, %s136
      %p140 = scmp.eq.s32.totalorder %s16, 0
      %p141 = por %p139, %p140
      %p142 = scmp.ne.s32.totalorder %s134, %s136
      %p143 = scmp.eq.s32.totalorder %s21, 3
      %p144 = por %p142, %p143
      %p145 = scmp.ne.s32.totalorder %s136, %s137
      %p146 = scmp.eq.s32.totalorder %s21, 0
      %p147 = por %p145, %p146
      %p148 = scmp.ne.s32.totalorder %s136, %s137
      %p149 = scmp.eq.s32.totalorder %s22, 3
      %p150 = por %p148, %p149
      %p152 = scmp.ne.s32.totalorder %s137, %s151
      %p153 = scmp.eq.s32.totalorder %s22, 0
      %p154 = por %p152, %p153
      %s156 = sadd.s32 %s155, 1
      %p159 = scmp.eq.s32.totalorder %s16, 3
      %p160 = scmp.ne.s32.totalorder %s155, %s157
      %p161 = scmp.eq.s32.totalorder %s16, 0
      %p162 = por %p160, %p161
      %p163 = scmp.ne.s32.totalorder %s155, %s157
      %p164 = scmp.eq.s32.totalorder %s21, 3
      %p165 = por %p163, %p164
      %p166 = scmp.ne.s32.totalorder %s157, %s158
      %p167 = scmp.eq.s32.totalorder %s21, 0
      %p168 = por %p166, %p167
      %p169 = scmp.ne.s32.totalorder %s157, %s158
      %p170 = scmp.eq.s32.totalorder %s22, 3
      %p171 = por %p169, %p170
      %p173 = scmp.ne.s32.totalorder %s158, %s172
      %p174 = scmp.eq.s32.totalorder %s22, 0
      %p175 = por %p173, %p174
      %s176 = ssub.s32 %s16, %s23
      %p177 = scmp.eq.s32.totalorder %s176, 0
      %s179 = sadd.s32 %s178, 1
      %s180 = scalar_select %p177, %s178, %s179
      %p183 = pneg %p177
      %p184 = scmp.eq.s32.totalorder %s16, 3
      %p185 = por %p183, %p184
      %p186 = scmp.ne.s32.totalorder %s178, %s181
      %p187 = scmp.eq.s32.totalorder %s16, 0
      %p188 = por %p186, %p187
      %p189 = scmp.ne.s32.totalorder %s178, %s181
      %p190 = scmp.eq.s32.totalorder %s21, 3
      %p191 = por %p189, %p190
      %p192 = scmp.ne.s32.totalorder %s181, %s182
      %p193 = scmp.eq.s32.totalorder %s21, 0
      %p194 = por %p192, %p193
      %p195 = scmp.ne.s32.totalorder %s181, %s182
      %p196 = scmp.eq.s32.totalorder %s22, 3
      %p197 = por %p195, %p196
      %p199 = scmp.ne.s32.totalorder %s182, %s198
      %p200 = scmp.eq.s32.totalorder %s22, 0
      %p201 = por %p199, %p200
      %p202 = scmp.le.s32.totalorder 1, %s16
      %p203 = scmp.lt.s32.totalorder %s16, 5
      %p204 = pnand %p202, %p203
      %p205 = pneg %p204
      // Predicated region
      $region9: #{dqn_forward.1} parent=5 // pred_check
        _
      $region10: #{dqn_forward.1} parent=5 // pred_check_branch
        %207 = sbr.rel (%p204) target = $region12
      $region11: #{dqn_forward.1} parent=5 // pred_region
        %s208 = ssub.s32 %s16, 1
        // Predicated region
        $region13: #{dqn_forward.1} parent=11 // pred_check
          %p209 = pneg %p63
        $region14: #{dqn_forward.1} parent=11 // pred_check_branch
          %211 = sbr.rel (%p209) target = $region16
        $region15: #{dqn_forward.1} parent=11 // pred_region
          _
        $region16: #{dqn_forward.1} parent=11 // pred_fallthru
          _
        // Predicated region
        $region17: #{dqn_forward.1} parent=11 // pred_check
          %p212 = pneg %p84
        $region18: #{dqn_forward.1} parent=11 // pred_check_branch
          %214 = sbr.rel (%p212) target = $region20
        $region19: #{dqn_forward.1} parent=11 // pred_region
          _
        $region20: #{dqn_forward.1} parent=11 // pred_fallthru
          _
        // Predicated region
        $region21: #{dqn_forward.1} parent=11 // pred_check
          %p215 = pneg %p105
        $region22: #{dqn_forward.1} parent=11 // pred_check_branch
          %217 = sbr.rel (%p215) target = $region24
        $region23: #{dqn_forward.1} parent=11 // pred_region
          _
        $region24: #{dqn_forward.1} parent=11 // pred_fallthru
          _
        // Predicated region
        $region25: #{dqn_forward.1} parent=11 // pred_check
          %p218 = pneg %p126
        $region26: #{dqn_forward.1} parent=11 // pred_check_branch
          %220 = sbr.rel (%p218) target = $region28
        $region27: #{dqn_forward.1} parent=11 // pred_region
          _
        $region28: #{dqn_forward.1} parent=11 // pred_fallthru
          _
        // Predicated region
        $region29: #{dqn_forward.1} parent=11 // pred_check
          %p221 = pneg %p147
        $region30: #{dqn_forward.1} parent=11 // pred_check_branch
          %223 = sbr.rel (%p221) target = $region32
        $region31: #{dqn_forward.1} parent=11 // pred_region
          _
        $region32: #{dqn_forward.1} parent=11 // pred_fallthru
          _
        // Predicated region
        $region33: #{dqn_forward.1} parent=11 // pred_check
          %p224 = pneg %p168
        $region34: #{dqn_forward.1} parent=11 // pred_check_branch
          %226 = sbr.rel (%p224) target = $region36
        $region35: #{dqn_forward.1} parent=11 // pred_region
          _
        $region36: #{dqn_forward.1} parent=11 // pred_fallthru
          _
      $region12: #{dqn_forward.1} parent=5 // pred_fallthru
        _
      %p227 = scmp.lt.s32.totalorder %s16, 4
      // Predicated region
      $region37: #{dqn_forward.1} parent=5 // pred_check
        %p228 = pneg %p227
      $region38: #{dqn_forward.1} parent=5 // pred_check_branch
        %230 = sbr.rel (%p228) target = $region40
      $region39: #{dqn_forward.1} parent=5 // pred_region
        // Predicated region
        $region41: #{dqn_forward.1} parent=39 // pred_check
          %p231 = pneg %p36
        $region42: #{dqn_forward.1} parent=39 // pred_check_branch
          %233 = sbr.rel (%p231) target = $region44
        $region43: #{dqn_forward.1} parent=39 // pred_region
          %s234 = sand.u32 %s26, 1
          %s235 = sand.u32 %s26, 1
          %s236 = smul.addr %s235, 16
          %s237 = scalar_lea.vmem [#allocation2], %s236
          %s238 = smul.u32 2, %s16
          %s239 = smul.addr %s238, 4
          %s240 = scalar_lea.vmem %s0, %s239
          // Predicated region
          $region45: #{dqn_forward.1} parent=43 // pred_check
            _
          $region46: #{dqn_forward.1} parent=43 // pred_check_branch
            %242 = sbr.rel (0) target = $region48
          $region47: #{dqn_forward.1} parent=43 // pred_region
            // Predicated region
            $region49: #{dqn_forward.1} parent=47 // pred_check
              _
            $region50: #{dqn_forward.1} parent=47 // pred_check_branch
              %244 = sbr.rel (0) target = $region52
            $region51: #{dqn_forward.1} parent=47 // pred_region
              // Predicated region
              $region64: #{dqn_forward.1} parent=51 // pred_check
                _
              $region65: #{dqn_forward.1} parent=51 // pred_check_branch
                %261 = sbr.rel (0) target = $region67
              $region66: #{dqn_forward.1} parent=51 // pred_region
                loop: start=0, step=1, limit=1
                $region68: #{dqn_forward.1} parent=66 // loop_pre_header
                  _
                $region69: #{dqn_forward.1} parent=66 // loop_header
                  %s263 = sphi 0, %s267
                  %p264 = scmp.ge.s32.totalorder %s263, 1
                  %s268 = sphi %s240, %s240
                  %s269 = sphi %s237, %s237
                $region70: #{dqn_forward.1} parent=66 // loop_header_branch
                  %266 = sbr.rel (%p264) target = $region74
                $region71: #{dqn_forward.1} parent=66 // loop_body
                  %v270 = vld [vmem:[%s268] sm:$0xff]
                  %271 = vst [vmem:[%s269] sm:$0xff] %v270
                  %v272 = vld [vmem:[%s268 + $0x20] sm:$0xff]
                  %273 = vst [vmem:[%s269 + $0x8] sm:$0xff] %v272
                $region72: #{dqn_forward.1} parent=66 // loop_footer
                  %s267 = sadd.s32 1, %s263
                $region73: #{dqn_forward.1} parent=66 // loop_footer_branch
                  %262 = sbr.rel target = $region69
                $region74: #{dqn_forward.1} parent=66 // loop_exit
                  _
              $region67: #{dqn_forward.1} parent=51 // pred_fallthru
                _
              // Predicated region
              $region75: #{dqn_forward.1} parent=51 // pred_check
                _
              $region76: #{dqn_forward.1} parent=51 // pred_check_branch
                %275 = sbr.rel target = $region78
              $region77: #{dqn_forward.1} parent=51 // pred_region
                _
              $region78: #{dqn_forward.1} parent=51 // pred_fallthru
                _
            $region52: #{dqn_forward.1} parent=47 // pred_fallthru
              _
            // Predicated region
            $region53: #{dqn_forward.1} parent=47 // pred_check
              _
            $region54: #{dqn_forward.1} parent=47 // pred_check_branch
              %246 = sbr.rel target = $region56
            $region55: #{dqn_forward.1} parent=47 // pred_region
              loop: start=0, step=1, limit=1
              $region57: #{dqn_forward.1} parent=55 // loop_pre_header
                _
              $region58: #{dqn_forward.1} parent=55 // loop_header
                %s249 = sphi 0, %s253
                %p250 = scmp.ge.s32.totalorder %s249, 1
                %s254 = sphi %s240, %s240
                %s255 = sphi %s237, %s237
              $region59: #{dqn_forward.1} parent=55 // loop_header_branch
                %252 = sbr.rel (%p250) target = $region63
              $region60: #{dqn_forward.1} parent=55 // loop_body
                %v256 = vld [vmem:[%s254] sm:$0xff]
                %257 = vst [vmem:[%s255] sm:$0xff] %v256
                %v258 = vld [vmem:[%s254 + $0x20] sm:$0xff]
                %259 = vst [vmem:[%s255 + $0x8] sm:$0xff] %v258
              $region61: #{dqn_forward.1} parent=55 // loop_footer
                %s253 = sadd.s32 1, %s249
              $region62: #{dqn_forward.1} parent=55 // loop_footer_branch
                %248 = sbr.rel target = $region58
              $region63: #{dqn_forward.1} parent=55 // loop_exit
                _
            $region56: #{dqn_forward.1} parent=47 // pred_fallthru
              _
          $region48: #{dqn_forward.1} parent=43 // pred_fallthru
            _
          %276 = vnop
        $region44: #{dqn_forward.1} parent=39 // pred_fallthru
          _
      $region40: #{dqn_forward.1} parent=5 // pred_fallthru
        _
      %p277 = scmp.le.s32.totalorder 1, %s16
      %p278 = scmp.lt.s32.totalorder %s16, 5
      %p279 = pnand %p277, %p278
      %p280 = pneg %p279
      // Predicated region
      $region79: #{dqn_forward.1} parent=5 // pred_check
        _
      $region80: #{dqn_forward.1} parent=5 // pred_check_branch
        %282 = sbr.rel (%p279) target = $region82
      $region81: #{dqn_forward.1} parent=5 // pred_region
        %s283 = ssub.s32 %s16, 1
        %s284 = sand.u32 %s29, 1
        %s285 = sand.u32 %s29, 1
        %s286 = smul.addr %s285, 16
        %s287 = scalar_lea.vmem [#allocation2], %s286
        // Predicated region
        $region83: #{dqn_forward.1} parent=81 // pred_check
          %p288 = pneg %p42
        $region84: #{dqn_forward.1} parent=81 // pred_check_branch
          %290 = sbr.rel (%p288) target = $region86
        $region85: #{dqn_forward.1} parent=81 // pred_region
          _
        $region86: #{dqn_forward.1} parent=81 // pred_fallthru
          _
        %s291 = sand.u32 %s29, 1
        %s292 = sand.u32 %s29, 1
        %s293 = smul.addr %s292, 16
        %s294 = scalar_lea.vmem [#allocation2], %s293
        %p295 = pneg %p42
        %p296 = pneg %p39
        %p297 = pneg %p63
        %p298 = pneg %p60
        %p299 = pneg %p84
        %p300 = pneg %p81
        %p301 = pneg %p105
        %p302 = pneg %p102
        %p303 = pneg %p126
        %p304 = pneg %p123
        %p305 = pneg %p147
        %p306 = pneg %p144
        %p307 = pneg %p168
        %p308 = pneg %p165
        %p309 = pneg %p194
        %p310 = pneg %p191
        %s311 = sand.u32 %s181, 1
        %s312 = scalar_lea.sflag [#allocation4], %s311
        %s313 = sand.u32 %s181, 1
        %s314 = smul.addr %s313, 8
        %s315 = scalar_lea.vmem [#allocation3], %s314
        %s316 = smul.u32 2, %s21
        %s317 = smul.u32 2, %s21
        %v319 = vld [vmem:[%s1] sm:$0xf]
        %v320 = vld [vmem:[%s1 + $0x4] sm:$0xf]
        %v321 = vld [vmem:[%s1 + $0x8] sm:$0xf]
        %v322 = vld [vmem:[%s1 + $0xc] sm:$0xf]
        %v323 = vld [vmem:[%s287] sm:$0xff]
        %v324 = vld [vmem:[%s287 + $0x8] sm:$0xff]
        %v325 = vld [vmem:[%s2] sm:$0xff]
        %v326 = vld [vmem:[%s2 + $0x8] sm:$0xff]
        %v327 = vld [vmem:[%s2 + $0x10] sm:$0xff]
        %v328 = vld [vmem:[%s2 + $0x18] sm:$0xff]
        %330 = vset.pattern.permute.xlu0 0
        %331 = vperm.xlu0 %330, %v325
        %v332 = vpop.permute.xlu0 %331
        %335 = vset.pattern.permute.xlu0 0
        %336 = vperm.xlu0 %335, %v326
        %v337 = vpop.permute.xlu0 %336
        %340 = vset.pattern.permute.xlu0 0
        %341 = vperm.xlu0 %340, %v327
        %v342 = vpop.permute.xlu0 %341
        %345 = vset.pattern.permute.xlu0 0
        %346 = vperm.xlu0 %345, %v328
        %v347 = vpop.permute.xlu0 %346
        %v353 = vunpack.c.l.b16 %v319
        %v354 = vunpack.c.l.b16 %v320
        %v355 = vunpack.c.l.b16 %v321
        %v356 = vunpack.c.l.b16 %v322
        %v357 = vpack.c.b16 %v354, %v353
        %v358 = vpack.c.b16 %v356, %v355
        %v361 = vunpack.c.l.b16 %v323
        %v362 = vunpack.c.h.b16 %v323
        %v363 = vunpack.c.l.b16 %v324
        %v364 = vunpack.c.h.b16 %v324
        %v365 = vpack.c.b16 %v363, %v361
        %v366 = vpack.c.b16 %v364, %v362
        %vm369 = vcmask 130048
        %v371 = vsel %vm369, %v357, 0
        %v374 = vsel %vm369, %v358, 0
        %376 = vmatprep.subr.bf16.mxu0 %v366
        %377 = vmatpush1.bf16.msra.mxu0 %v365
        %378 = vmatprep.subr.bf16.mxu0 0
        %379 = vmatpush1.bf16.msra.mxu0 0
        %380 = vmatprep.subr.bf16.mxu0 0
        %381 = vmatpush1.bf16.msra.mxu0 0
        %382 = vmatprep.subr.bf16.mxu0 0
        %383 = vmatpush1.bf16.msra.mxu0 0
        %384 = vmatprep.subr.bf16.mxu0 0
        %385 = vmatpush1.bf16.msra.mxu0 0
        %386 = vmatprep.subr.bf16.mxu0 0
        %387 = vmatpush1.bf16.msra.mxu0 0
        %388 = vmatprep.subr.bf16.mxu0 0
        %389 = vmatpush1.bf16.msra.mxu0 0
        %390 = vmatprep.subr.bf16.mxu0 0
        %391 = vmatpush1.bf16.msra.mxu0 0
        %392 = vmatprep.subr.bf16.mxu0 0
        %393 = vmatpush1.bf16.msra.mxu0 0
        %394 = vmatprep.subr.bf16.mxu0 0
        %395 = vmatpush1.bf16.msra.mxu0 0
        %396 = vmatprep.subr.bf16.mxu0 0
        %397 = vmatpush1.bf16.msra.mxu0 0
        %398 = vmatprep.subr.bf16.mxu0 0
        %399 = vmatpush1.bf16.msra.mxu0 0
        %400 = vmatprep.subr.bf16.mxu0 0
        %401 = vmatpush1.bf16.msra.mxu0 0
        %402 = vmatprep.subr.bf16.mxu0 0
        %403 = vmatpush1.bf16.msra.mxu0 0
        %404 = vmatprep.subr.bf16.mxu0 0
        %405 = vmatpush1.bf16.msra.mxu0 0
        %406 = vmatprep.subr.bf16.mxu0 0
        %407 = vmatpush1.bf16.msra.mxu0 0
        %408 = vmatprep.mubr.bf16.mxu0 0
        %409 = vmatmul.mubr.bf16.gmra.mrb[0].mxu0 %v371
        %v410 = vpop.f32.mrb[0].mxu0
        %v411 = vadd.f32 %v332, %v410
        %v412 = vpop.f32.mrb[0].mxu0
        %v413 = vadd.f32 %v332, %v412
        %v414 = vpop.f32.mrb[0].mxu0
        %v415 = vadd.f32 %v337, %v414
        %v416 = vpop.f32.mrb[0].mxu0
        %v417 = vadd.f32 %v337, %v416
        %418 = vmatprep.mubr.bf16.mxu0 0
        %419 = vmatmul.mubr.bf16.gmra.mrb[0].mxu0 %v374
        %v420 = vpop.f32.mrb[0].mxu0
        %v421 = vadd.f32 %v342, %v420
        %v422 = vpop.f32.mrb[0].mxu0
        %v423 = vadd.f32 %v342, %v422
        %v424 = vpop.f32.mrb[0].mxu0
        %v425 = vadd.f32 %v347, %v424
        %v426 = vpop.f32.mrb[0].mxu0
        %v427 = vadd.f32 %v347, %v426
        %428 = vdwg.mxu0
        %v429 = vmax.f32 %v411, 0.0
        %v430 = vmax.f32 %v413, 0.0
        %v431 = vmax.f32 %v415, 0.0
        %v432 = vmax.f32 %v417, 0.0
        %v433 = vmax.f32 %v421, 0.0
        %v434 = vmax.f32 %v423, 0.0
        %v435 = vmax.f32 %v425, 0.0
        %v436 = vmax.f32 %v427, 0.0
        %v437 = vld [vmem:[%s3] sm:$0xf]
        %v438 = vld [vmem:[%s3 + $0x4] sm:$0xf]
        %v439 = vld [vmem:[%s3 + $0x8] sm:$0xf]
        %v440 = vld [vmem:[%s3 + $0xc] sm:$0xf]
        %v441 = vpack.c.bf16 %v431, %v429
        %v442 = vpack.c.bf16 %v432, %v430
        %v443 = vpack.c.bf16 %v435, %v433
        %v444 = vpack.c.bf16 %v436, %v434
        %v445 = vld [vmem:[%s4] sm:$0xff]
        %v446 = vld [vmem:[%s4 + $0x8] sm:$0xff]
        %v447 = vld [vmem:[%s4 + $0x10] sm:$0xff]
        %v448 = vld [vmem:[%s4 + $0x18] sm:$0xff]
        %450 = vset.pattern.permute.xlu0 0
        %451 = vperm.xlu0 %450, %v445
        %v452 = vpop.permute.xlu0 %451
        %455 = vset.pattern.permute.xlu0 0
        %456 = vperm.xlu0 %455, %v446
        %v457 = vpop.permute.xlu0 %456
        %460 = vset.pattern.permute.xlu0 0
        %461 = vperm.xlu0 %460, %v447
        %v462 = vpop.permute.xlu0 %461
        %465 = vset.pattern.permute.xlu0 0
        %466 = vperm.xlu0 %465, %v448
        %v467 = vpop.permute.xlu0 %466
        %v473 = vunpack.c.l.b16 %v437
        %v474 = vunpack.c.l.b16 %v438
        %v475 = vunpack.c.l.b16 %v439
        %v476 = vunpack.c.l.b16 %v440
        %v477 = vpack.c.b16 %v474, %v473
        %v478 = vpack.c.b16 %v476, %v475
        %vm479 = vcmask 261120
        %v481 = vsel %vm479, %v477, 0
        %v484 = vsel %vm479, %v478, 0
        %486 = vmatprep.subr.bf16.mxu0 %v442
        %487 = vmatpush1.bf16.msra.mxu0 %v441
        %488 = vmatprep.subr.bf16.mxu0 %v444
        %489 = vmatpush1.bf16.msra.mxu0 %v443
        %490 = vmatprep.subr.bf16.mxu0 0
        %491 = vmatpush1.bf16.msra.mxu0 0
        %492 = vmatprep.subr.bf16.mxu0 0
        %493 = vmatpush1.bf16.msra.mxu0 0
        %494 = vmatprep.subr.bf16.mxu0 0
        %495 = vmatpush1.bf16.msra.mxu0 0
        %496 = vmatprep.subr.bf16.mxu0 0
        %497 = vmatpush1.bf16.msra.mxu0 0
        %498 = vmatprep.subr.bf16.mxu0 0
        %499 = vmatpush1.bf16.msra.mxu0 0
        %500 = vmatprep.subr.bf16.mxu0 0
        %501 = vmatpush1.bf16.msra.mxu0 0
        %502 = vmatprep.subr.bf16.mxu0 0
        %503 = vmatpush1.bf16.msra.mxu0 0
        %504 = vmatprep.subr.bf16.mxu0 0
        %505 = vmatpush1.bf16.msra.mxu0 0
        %506 = vmatprep.subr.bf16.mxu0 0
        %507 = vmatpush1.bf16.msra.mxu0 0
        %508 = vmatprep.subr.bf16.mxu0 0
        %509 = vmatpush1.bf16.msra.mxu0 0
        %510 = vmatprep.subr.bf16.mxu0 0
        %511 = vmatpush1.bf16.msra.mxu0 0
        %512 = vmatprep.subr.bf16.mxu0 0
        %513 = vmatpush1.bf16.msra.mxu0 0
        %514 = vmatprep.subr.bf16.mxu0 0
        %515 = vmatpush1.bf16.msra.mxu0 0
        %516 = vmatprep.subr.bf16.mxu0 0
        %517 = vmatpush1.bf16.msra.mxu0 0
        %518 = vmatprep.mubr.bf16.mxu0 0
        %519 = vmatmul.mubr.bf16.gmra.mrb[0].mxu0 %v481
        %v520 = vpop.f32.mrb[0].mxu0
        %v521 = vadd.f32 %v452, %v520
        %v522 = vpop.f32.mrb[0].mxu0
        %v523 = vadd.f32 %v452, %v522
        %v524 = vpop.f32.mrb[0].mxu0
        %v525 = vadd.f32 %v457, %v524
        %v526 = vpop.f32.mrb[0].mxu0
        %v527 = vadd.f32 %v457, %v526
        %528 = vmatprep.mubr.bf16.mxu0 0
        %529 = vmatmul.mubr.bf16.gmra.mrb[0].mxu0 %v484
        %v530 = vpop.f32.mrb[0].mxu0
        %v531 = vadd.f32 %v462, %v530
        %v532 = vpop.f32.mrb[0].mxu0
        %v533 = vadd.f32 %v462, %v532
        %v534 = vpop.f32.mrb[0].mxu0
        %v535 = vadd.f32 %v467, %v534
        %v536 = vpop.f32.mrb[0].mxu0
        %v537 = vadd.f32 %v467, %v536
        %538 = vdwg.mxu0
        %v539 = vmax.f32 %v521, 0.0
        %v540 = vmax.f32 %v523, 0.0
        %v541 = vmax.f32 %v525, 0.0
        %v542 = vmax.f32 %v527, 0.0
        %v543 = vmax.f32 %v531, 0.0
        %v544 = vmax.f32 %v533, 0.0
        %v545 = vmax.f32 %v535, 0.0
        %v546 = vmax.f32 %v537, 0.0
        %v547 = vld [vmem:[%s5] sm:$0x3]
        %v548 = vpack.c.bf16 %v541, %v539
        %v549 = vpack.c.bf16 %v542, %v540
        %v550 = vpack.c.bf16 %v545, %v543
        %v551 = vpack.c.bf16 %v546, %v544
        %v552 = vld [vmem:[%s6] sm:$0xf]
        %554 = vset.pattern.permute.xlu0 0
        %555 = vperm.xlu0 %554, %v552
        %v556 = vpop.permute.xlu0 %555
        %v559 = vsel %vm479, %v547, 0
        %561 = vmatprep.subr.bf16.mxu0 %v549
        %562 = vmatpush1.bf16.msra.mxu0 %v548
        %563 = vmatprep.subr.bf16.mxu0 %v551
        %564 = vmatpush1.bf16.msra.mxu0 %v550
        %565 = vmatprep.subr.bf16.mxu0 0
        %566 = vmatpush1.bf16.msra.mxu0 0
        %567 = vmatprep.subr.bf16.mxu0 0
        %568 = vmatpush1.bf16.msra.mxu0 0
        %569 = vmatprep.subr.bf16.mxu0 0
        %570 = vmatpush1.bf16.msra.mxu0 0
        %571 = vmatprep.subr.bf16.mxu0 0
        %572 = vmatpush1.bf16.msra.mxu0 0
        %573 = vmatprep.subr.bf16.mxu0 0
        %574 = vmatpush1.bf16.msra.mxu0 0
        %575 = vmatprep.subr.bf16.mxu0 0
        %576 = vmatpush1.bf16.msra.mxu0 0
        %577 = vmatprep.subr.bf16.mxu0 0
        %578 = vmatpush1.bf16.msra.mxu0 0
        %579 = vmatprep.subr.bf16.mxu0 0
        %580 = vmatpush1.bf16.msra.mxu0 0
        %581 = vmatprep.subr.bf16.mxu0 0
        %582 = vmatpush1.bf16.msra.mxu0 0
        %583 = vmatprep.subr.bf16.mxu0 0
        %584 = vmatpush1.bf16.msra.mxu0 0
        %585 = vmatprep.subr.bf16.mxu0 0
        %586 = vmatpush1.bf16.msra.mxu0 0
        %587 = vmatprep.subr.bf16.mxu0 0
        %588 = vmatpush1.bf16.msra.mxu0 0
        %589 = vmatprep.subr.bf16.mxu0 0
        %590 = vmatpush1.bf16.msra.mxu0 0
        %591 = vmatprep.subr.bf16.mxu0 0
        %592 = vmatpush1.bf16.msra.mxu0 0
        %593 = vmatprep.mubr.bf16.mxu0 0
        %594 = vmatmul.mubr.bf16.gmra.mrb[0].mxu0 %v559
        %v595 = vpop.f32.mrb[0].mxu0
        %v596 = vadd.f32 %v556, %v595
        %v597 = vpop.f32.mrb[0].mxu0
        %v598 = vadd.f32 %v556, %v597
        %v599 = vpop.f32.mrb[0].mxu0
        %v600 = vpop.f32.mrb[0].mxu0
        %601 = vdwg.mxu0
        %v604 = vcombine.low %v596, %v598
        %606 = vst [vmem:[%s315] sm:$0xff] %v604
        %s607 = sand.u32 %s181, 1
        %s608 = scalar_lea.sflag [#allocation4], %s607
        %s609 = sand.u32 %s181, 1
        %s610 = smul.addr %s609, 8
        %s611 = scalar_lea.vmem [#allocation3], %s610
        // Predicated region
        $region87: #{dqn_forward.1} parent=81 // pred_check
          %p612 = pneg %p191
        $region88: #{dqn_forward.1} parent=81 // pred_check_branch
          %614 = sbr.rel (%p612) target = $region90
        $region89: #{dqn_forward.1} parent=81 // pred_region
          %s615 = smul.u32 2, %s21
          %s617 = ssub.s32 128, 128
          %618 = vsyncadd %s608, %s617
          %s619 = smul.addr %s615, 64
          %s620 = scalar_lea.hbm %s7, %s619
          %s622 = sshll.u32 %s611, 4
          %s623 = int_to_ptr.vmem [resolvable:$true] %s622
          %625 = dma.vmem_to_hbm [thread:$0]  %s623, 128, %s620, %s608
        $region90: #{dqn_forward.1} parent=81 // pred_fallthru
          _
      $region82: #{dqn_forward.1} parent=5 // pred_fallthru
        _
      %p626 = scmp.le.s32.totalorder 2, %s16
      // Predicated region
      $region91: #{dqn_forward.1} parent=5 // pred_check
        %p627 = pneg %p626
      $region92: #{dqn_forward.1} parent=5 // pred_check_branch
        %629 = sbr.rel (%p627) target = $region94
      $region93: #{dqn_forward.1} parent=5 // pred_region
        %s630 = ssub.s32 %s16, 2
        // Predicated region
        $region95: #{dqn_forward.1} parent=93 // pred_check
          %p631 = pneg %p197
        $region96: #{dqn_forward.1} parent=93 // pred_check_branch
          %633 = sbr.rel (%p631) target = $region98
        $region97: #{dqn_forward.1} parent=93 // pred_region
          %s634 = sand.u32 %s182, 1
          %s635 = scalar_lea.sflag [#allocation4], %s634
          %s636 = sand.u32 %s182, 1
          %s637 = smul.addr %s636, 8
          %s638 = scalar_lea.vmem [#allocation3], %s637
          %639 = dma.done %s635, 128
        $region98: #{dqn_forward.1} parent=93 // pred_fallthru
          _
      $region94: #{dqn_forward.1} parent=5 // pred_fallthru
        _
    $region6: #{dqn_forward.1} parent=1 // loop_footer
      %s20 = sadd.s32 1, %s16
    $region7: #{dqn_forward.1} parent=1 // loop_footer_branch
      %15 = sbr.rel target = $region3
    $region8: #{dqn_forward.1} parent=1 // loop_exit
      _
    %640 = vsyncpa [#allocation4], 1
    %s641 = scalar_lea.sflag [#allocation4], 1
    %642 = vsyncpa %s641, 1

</llo_original>
